<compile_context>
chip_gen: v7x
topology: tpu7x:2x2x1
jax: 0.10.0
libtpu: 0.0.40
codegen_flags: <defaults>
</compile_context>

<pallas_src>
import functools

import numpy as np

import jax
import jax.numpy as jnp
from jax import lax
from jax.experimental import pallas as pl
from jax.experimental.pallas import tpu as pltpu


def _round_up(x, m):
    return ((x + m - 1) // m) * m


def _block_partial(x, colw, wy, *, penalty, W):
    """Per-block math on a lane-dense (tR, Lp) f32 tile -> (1, Lp) partial."""
    tR, Lp = x.shape
    wz = colw[0:1, :]                                # W-direction col weights
    wx = colw[1:2, :]                                # H-direction col weights
    pen = (lambda d: d * d) if penalty == 'l2' else jnp.abs

    # W-direction: lane pair (c, c+1)                (XLU lane roll)
    dz = pen(pltpu.roll(x, Lp - 1, axis=1) - x)
    # H-direction: lane pair (c, c+W)                (XLU lane roll)
    dx = pen(pltpu.roll(x, (Lp - W) % Lp, axis=1) - x)
    # D-direction: sublane pair (r, r+1) in-block    (XLU sublane roll)
    dy = pen(pltpu.roll(x, tR - 1, axis=0) - x)
    local = lax.broadcasted_iota(jnp.int32, (tR, 1), 0)
    wy_in = jnp.where(local < tR - 1, wy, 0.0)       # drop the wrapped row

    contrib = dz * wz + dx * wx + dy * wy_in         # pure VPU mul/add
    return jnp.sum(contrib, axis=0, keepdims=True), pen


def _grad3d_kernel_single(x_ref, colw_ref, roww_ref, out_ref, *, penalty, W):
    x = x_ref[...].astype(jnp.float32)
    partial, _ = _block_partial(x, colw_ref[...], roww_ref[...],
                                penalty=penalty, W=W)
    out_ref[...] = partial.reshape(out_ref.shape)


def _grad3d_kernel_halo(x_ref, halo_ref, colw_ref, roww_ref, out_ref, *,
                        penalty, W):
    tR, _ = x_ref.shape
    x = x_ref[...].astype(jnp.float32)
    wy = roww_ref[...]
    partial, pen = _block_partial(x, colw_ref[...], wy, penalty=penalty, W=W)
    # D-direction seam: this block's last row vs. the next block's first row.
    nxt = halo_ref[0:1, :].astype(jnp.float32)
    seam = pen(nxt - x[tR - 1:tR, :]) * wy[tR - 1:tR, :]
    out_ref[...] = (partial + seam).reshape(out_ref.shape)


def grad3d_loss(y_pred, y_true=None, *, penalty='l1', loss_mult=None,
                block_rows=None, target_block_bytes=2 << 20):
    """Pallas implementation of Grad3d.forward. Returns a scalar float32."""
    N, C, D, H, W = y_pred.shape
    B = N * C
    R = B * D                       # number of (b, d) planes
    L = H * W                       # flattened plane size
    Lp = _round_up(L, 128)          # lane-dense last dim
    itemsize = jnp.dtype(y_pred.dtype).itemsize

    # Row-block size: multiple of 8 sublanes, ~target_block_bytes per block.
    if block_rows is None:
        tR = max(8, (target_block_bytes // (Lp * itemsize)) // 8 * 8)
    else:
        tR = _round_up(int(block_rows), 8)
    tR = int(min(tR, _round_up(R, 8)))
    Rp = _round_up(R, tR)
    nb = Rp // tR

    xp = y_pred.reshape(R, L)
    if (Rp - R) or (Lp - L):
        xp = jnp.pad(xp, ((0, Rp - R), (0, Lp - L)))

    # Static per-direction weights (mean + /3 + loss_mult folded in).
    # TODO(synk): torch.mean over an empty diff (a spatial dim == 1) yields
    # NaN in the original; here a degenerate direction contributes 0 instead.
    base = (1.0 if loss_mult is None else float(loss_mult)) / 3.0
    n_dy = float(B * (D - 1) * H * W)
    n_dx = float(B * D * (H - 1) * W)
    n_dz = float(B * D * H * (W - 1))
    cy = base / n_dy if n_dy > 0 else 0.0
    cx = base / n_dx if n_dx > 0 else 0.0
    cz = base / n_dz if n_dz > 0 else 0.0

    # Column weight-masks (validity * weight), built host-side with numpy.
    cols = np.arange(Lp)
    in_l = cols < L
    wz_col = np.where(in_l & ((cols % W) != (W - 1)), cz, 0.0)
    wx_col = np.where(in_l & ((cols // W) != (H - 1)), cx, 0.0)
    colw = jnp.asarray(np.stack([wz_col, wx_col]).astype(np.float32))   # (2,Lp)

    # Row weight-mask: pair (r, r+1) valid iff r is real and not the last plane.
    rows = np.arange(Rp)
    wy_row = np.where((rows < R) & ((rows % D) != (D - 1)), cy, 0.0)
    roww = jnp.asarray(wy_row.astype(np.float32).reshape(Rp, 1))        # (Rp,1)

    flops = int(12 * Rp * Lp)
    compiler_params = pltpu.CompilerParams(
        dimension_semantics=("parallel",),
        vmem_limit_bytes=32 * 1024 * 1024,
    )

    if nb == 1:
        # Single-block fast path: no halo DMA / seam compute needed (the last
        # plane's row-weight is always zero).
        kernel = functools.partial(_grad3d_kernel_single, penalty=penalty, W=W)
        bytes_accessed = int(Rp * Lp * itemsize + (2 * Lp + Rp + Lp) * 4)
        partials = pl.pallas_call(
            kernel,
            out_shape=jax.ShapeDtypeStruct((nb, 1, Lp), jnp.float32),
            grid_spec=pltpu.PrefetchScalarGridSpec(
                num_scalar_prefetch=0,
                grid=(nb,),
                in_specs=[
                    pl.BlockSpec((tR, Lp), lambda k: (k, 0)),
                    pl.BlockSpec((2, Lp), lambda k: (0, 0)),
                    pl.BlockSpec((tR, 1), lambda k: (k, 0)),
                ],
                out_specs=pl.BlockSpec((1, 1, Lp), lambda k: (k, 0, 0)),
            ),
            compiler_params=compiler_params,
            cost_estimate=pl.CostEstimate(flops=flops, transcendentals=0,
                                          bytes_accessed=bytes_accessed),
        )(xp, colw, roww)
    else:
        t8 = tR // 8
        nb8 = Rp // 8
        kernel = functools.partial(_grad3d_kernel_halo, penalty=penalty, W=W)
        bytes_accessed = int((Rp * Lp + nb * 8 * Lp) * itemsize
                             + (2 * Lp + Rp + nb * Lp) * 4)
        partials = pl.pallas_call(
            kernel,
            out_shape=jax.ShapeDtypeStruct((nb, 1, Lp), jnp.float32),
            grid_spec=pltpu.PrefetchScalarGridSpec(
                num_scalar_prefetch=0,
                grid=(nb,),
                in_specs=[
                    # main row-block of planes
                    pl.BlockSpec((tR, Lp), lambda k: (k, 0)),
                    # 8-row halo = first rows of the *next* block (clamped)
                    pl.BlockSpec((8, Lp),
                                 lambda k: (jnp.minimum((k + 1) * t8, nb8 - 1), 0)),
                    # column weights (resident; same block every step)
                    pl.BlockSpec((2, Lp), lambda k: (0, 0)),
                    # row weights for this block
                    pl.BlockSpec((tR, 1), lambda k: (k, 0)),
                ],
                out_specs=pl.BlockSpec((1, 1, Lp), lambda k: (k, 0, 0)),
            ),
            compiler_params=compiler_params,
            cost_estimate=pl.CostEstimate(flops=flops, transcendentals=0,
                                          bytes_accessed=bytes_accessed),
        )(xp, xp, colw, roww)

    # Tiny final reduction over the lane-dense per-block partials.
    return jnp.sum(partials)


def _grad3d_ref(y_pred, penalty='l1', loss_mult=None):
    """Pure-JAX reference mirroring the PyTorch module."""
    dy = jnp.abs(y_pred[:, :, 1:, :, :] - y_pred[:, :, :-1, :, :])
    dx = jnp.abs(y_pred[:, :, :, 1:, :] - y_pred[:, :, :, :-1, :])
    dz = jnp.abs(y_pred[:, :, :, :, 1:] - y_pred[:, :, :, :, :-1])
    if penalty == 'l2':
        dy, dx, dz = dy * dy, dx * dx, dz * dz
    grad = (jnp.mean(dx) + jnp.mean(dy) + jnp.mean(dz)) / 3.0
    if loss_mult is not None:
        grad = grad * loss_mult
    return grad


if __name__ == "__main__":
    key = jax.random.PRNGKey(0)
    k1, k2, k3 = jax.random.split(key, 3)

    # (N, C, D, H, W) — single-block fast path (no halo).
    y_pred = jax.random.normal(k1, (2, 4, 8, 16, 16), dtype=jnp.float32)
    y_true = jax.random.normal(k2, (2, 4, 8, 16, 16), dtype=jnp.float32)  # unused

    out_l1 = jax.block_until_ready(grad3d_loss(y_pred, y_true, penalty='l1'))
    ref_l1 = _grad3d_ref(y_pred, penalty='l1')
    assert jnp.allclose(out_l1, ref_l1, rtol=1e-5, atol=1e-6), (out_l1, ref_l1)

    out_l2 = jax.block_until_ready(
        grad3d_loss(y_pred, y_true, penalty='l2', loss_mult=2.0))
    ref_l2 = _grad3d_ref(y_pred, penalty='l2', loss_mult=2.0)
    assert jnp.allclose(out_l2, ref_l2, rtol=1e-5, atol=1e-6), (out_l2, ref_l2)

    # Multi-block path: forces row padding + cross-block D seams + halo,
    # and non-multiple-of-128 plane size (column padding).
    y3 = jax.random.normal(k3, (1, 3, 7, 6, 10), dtype=jnp.float32)
    out_s = jax.block_until_ready(grad3d_loss(y3, None, penalty='l1', block_rows=8))
    ref_s = _grad3d_ref(y3, penalty='l1')
    assert jnp.allclose(out_s, ref_s, rtol=1e-5, atol=1e-6), (out_s, ref_s)

    out_s2 = jax.block_until_ready(
        grad3d_loss(y3, None, penalty='l2', loss_mult=0.5, block_rows=8))
    ref_s2 = _grad3d_ref(y3, penalty='l2', loss_mult=0.5)
    assert jnp.allclose(out_s2, ref_s2, rtol=1e-5, atol=1e-6), (out_s2, ref_s2)

    print("KERNEL_OK")
</pallas_src>

<mosaic_0001>
module attributes {stable_mosaic.version = 11 : i64} {
  func.func @_grad3d_kernel_single(%arg0: i32, %arg1: memref<64x256xf32, #tpu.memory_space<vmem>>, %arg2: memref<2x256xf32, #tpu.memory_space<vmem>>, %arg3: memref<64x1xf32, #tpu.memory_space<vmem>>, %arg4: memref<1x1x256xf32, #tpu.memory_space<vmem>>) attributes {dimension_semantics = [#tpu.dimension_semantics<parallel>], iteration_bounds = array<i64: 1>, scalar_prefetch = 0 : i64, scratch_operands = 0 : i64, tpu.core_type = #tpu.core_type<tc>, window_params = [{transform_indices = @transform_0, window_bounds = array<i64: 64, 256>}, {pipeline_mode = #tpu.pipeline_mode<synchronous>, transform_indices = @transform_1, window_bounds = array<i64: 2, 256>}, {transform_indices = @transform_2, window_bounds = array<i64: 64, 1>}, {transform_indices = @transform_3, window_bounds = array<i64: 1, 1, 256>}]} {
    %c0 = arith.constant 0 : index
    %c0_0 = arith.constant 0 : index
    %0 = vector.load %arg1[%c0, %c0_0] : memref<64x256xf32, #tpu.memory_space<vmem>>, vector<64x256xf32>
    %c0_1 = arith.constant 0 : index
    %c0_2 = arith.constant 0 : index
    %1 = vector.load %arg2[%c0_1, %c0_2] : memref<2x256xf32, #tpu.memory_space<vmem>>, vector<2x256xf32>
    %c0_3 = arith.constant 0 : index
    %c0_4 = arith.constant 0 : index
    %2 = vector.load %arg3[%c0_3, %c0_4] : memref<64x1xf32, #tpu.memory_space<vmem>>, vector<64x1xf32>
    %3 = vector.extract_strided_slice %1 {offsets = [0, 0], sizes = [1, 256], strides = [1, 1]} : vector<2x256xf32> to vector<1x256xf32>
    %4 = vector.extract_strided_slice %1 {offsets = [1, 0], sizes = [1, 256], strides = [1, 1]} : vector<2x256xf32> to vector<1x256xf32>
    %c255_i32 = arith.constant 255 : i32
    %5 = tpu.dynamic_rotate %0 by %c255_i32 dim 1 : vector<64x256xf32>, i32 -> vector<64x256xf32>
    %6 = arith.subf %5, %0 : vector<64x256xf32>
    %7 = math.absf %6 : vector<64x256xf32>
    %c240_i32 = arith.constant 240 : i32
    %8 = tpu.dynamic_rotate %0 by %c240_i32 dim 1 : vector<64x256xf32>, i32 -> vector<64x256xf32>
    %9 = arith.subf %8, %0 : vector<64x256xf32>
    %10 = math.absf %9 : vector<64x256xf32>
    %c63_i32 = arith.constant 63 : i32
    %11 = tpu.dynamic_rotate %0 by %c63_i32 dim 0 : vector<64x256xf32>, i32 -> vector<64x256xf32>
    %12 = arith.subf %11, %0 : vector<64x256xf32>
    %13 = math.absf %12 : vector<64x256xf32>
    %14 = tpu.iota {dimensions = array<i32: 0>} : vector<64x1xi32>
    %c63_i32_5 = arith.constant 63 : i32
    %15 = vector.broadcast %c63_i32_5 : i32 to vector<64x1xi32>
    %16 = arith.cmpi slt, %14, %15 : vector<64x1xi32>
    %cst = arith.constant 0.000000e+00 : f32
    %17 = vector.broadcast %cst : f32 to vector<64x1xf32>
    %18 = arith.select %16, %2, %17 : vector<64x1xi1>, vector<64x1xf32>
    %19 = vector.broadcast %3 : vector<1x256xf32> to vector<64x256xf32>
    %20 = arith.mulf %7, %19 : vector<64x256xf32>
    %21 = vector.broadcast %4 : vector<1x256xf32> to vector<64x256xf32>
    %22 = arith.mulf %10, %21 : vector<64x256xf32>
    %23 = arith.addf %20, %22 : vector<64x256xf32>
    %24 = vector.broadcast %18 : vector<64x1xf32> to vector<64x256xf32>
    %25 = arith.mulf %13, %24 : vector<64x256xf32>
    %26 = arith.addf %23, %25 : vector<64x256xf32>
    %cst_6 = arith.constant dense<0.000000e+00> : vector<256xf32>
    %27 = vector.multi_reduction <add>, %26, %cst_6 [0] : vector<64x256xf32> to vector<256xf32>
    %28 = vector.shape_cast %27 : vector<256xf32> to vector<1x256xf32>
    %29 = vector.shape_cast %28 : vector<1x256xf32> to vector<1x1x256xf32>
    %c0_7 = arith.constant 0 : index
    %c0_8 = arith.constant 0 : index
    %c0_9 = arith.constant 0 : index
    %30 = vector.load %arg4[%c0_7, %c0_8, %c0_9] : memref<1x1x256xf32, #tpu.memory_space<vmem>>, vector<1x1x256xf32>
    tpu.vector_store %arg4[%c0_7, %c0_8, %c0_9], %29 {strides = array<i32>} : memref<1x1x256xf32, #tpu.memory_space<vmem>>, vector<1x1x256xf32>,
    return
  }
  func.func @transform_0(%arg0: i32) -> (i32, i32) {
    %c0_i32 = arith.constant 0 : i32
    %c0_i32_0 = arith.constant 0 : i32
    return %arg0, %c0_i32 : i32, i32
  }
  func.func @transform_1(%arg0: i32) -> (i32, i32) {
    %c0_i32 = arith.constant 0 : i32
    %c0_i32_0 = arith.constant 0 : i32
    %c0_i32_1 = arith.constant 0 : i32
    return %c0_i32, %c0_i32_0 : i32, i32
  }
  func.func @transform_2(%arg0: i32) -> (i32, i32) {
    %c0_i32 = arith.constant 0 : i32
    %c0_i32_0 = arith.constant 0 : i32
    return %arg0, %c0_i32 : i32, i32
  }
  func.func @transform_3(%arg0: i32) -> (i32, i32, i32) {
    %c0_i32 = arith.constant 0 : i32
    %c0_i32_0 = arith.constant 0 : i32
    %c0_i32_1 = arith.constant 0 : i32
    return %arg0, %c0_i32, %c0_i32_0 : i32, i32, i32
  }
}

</mosaic_0001>

<llo_original>
// kernel: tpu_custom_call.1
$region0: #{tpu_custom_call.1}
  #allocation0 [shape = 'u32[]', space=smem, size = 0x4, offset = 0x4, fixed_abs, tag = 'smem constant byte address 0x4 - core index']
  #allocation1 [shape = 'u32[144,128]{1,0:T(1,128)}', space=vmem, size = 0x12000, scoped, tag = 'internal scratch']
  %s0 = inlined_call_operand.hbm [shape: f32[64,256], index: 0, kind: input, shape index: {}]
  %s1 = inlined_call_operand.vmem [shape: f32[2,256], index: 1, kind: input, shape index: {}]
  %s2 = inlined_call_operand.vmem [shape: f32[64,1], index: 2, kind: input, shape index: {}]
  %s3 = inlined_call_operand.hbm [shape: f32[1,1,256], index: 3, kind: output, shape index: {}]
  %s4 = sld [smem:[#allocation0]]
  $region26: #{tpu_custom_call.1} parent=0
    _
  %s6 = ssub.s32 1, %s4
  %s7 = scalar_select 0, %s6, %s4
  $region1: #{tpu_custom_call.1} parent=0
    #allocation2 [shape = 'u8[65536]{0}', space=vmem, size = 0x10000, scoped, tag = 'input window, operand 0, single buffered']
    #allocation3 [shape = 's32[1]{0}', space=sflag, size = 0x4, scoped, tag = 'scoped memory for tpu_custom_call.1']
    #allocation4 [shape = 's32[1]{0}', space=sflag, size = 0x4, scoped, tag = 'scoped memory for tpu_custom_call.1']
    #allocation5 [shape = 'u8[1024]{0}', space=vmem, size = 0x400, scoped, tag = 'output window, operand 0, single buffered']
    %8 = vsyncpa [#allocation3], 0
    %9 = vsyncpa [#allocation4], 0
    // Predicated region
    $region2: #{tpu_custom_call.1} parent=1 // pred_check
      _
    $region3: #{tpu_custom_call.1} parent=1 // pred_check_branch
      %11 = sbr.rel (0) target = $region5
    $region4: #{tpu_custom_call.1} parent=1 // pred_region
      %s13 = ssub.s32 2048, 2048
      %14 = vsyncadd [#allocation3], %s13
      %s15 = sshll.u32 [#allocation2], 4
      %s16 = int_to_ptr.vmem [resolvable:$true] %s15
      %21 = dma.hbm_to_vmem [thread:$0]  %s0, 2048, %s16, [#allocation3], 256, 256, 16
    $region5: #{tpu_custom_call.1} parent=1 // pred_fallthru
      _
    // Predicated region
    $region6: #{tpu_custom_call.1} parent=1 // pred_check
      _
    $region7: #{tpu_custom_call.1} parent=1 // pred_check_branch
      %23 = sbr.rel (0) target = $region9
    $region8: #{tpu_custom_call.1} parent=1 // pred_region
      _
    $region9: #{tpu_custom_call.1} parent=1 // pred_fallthru
      _
    // Predicated region
    $region10: #{tpu_custom_call.1} parent=1 // pred_check
      _
    $region11: #{tpu_custom_call.1} parent=1 // pred_check_branch
      %25 = sbr.rel (0) target = $region13
    $region12: #{tpu_custom_call.1} parent=1 // pred_region
      _
    $region13: #{tpu_custom_call.1} parent=1 // pred_fallthru
      _
    // Predicated region
    $region14: #{tpu_custom_call.1} parent=1 // pred_check
      _
    $region15: #{tpu_custom_call.1} parent=1 // pred_check_branch
      %27 = sbr.rel (0) target = $region17
    $region16: #{tpu_custom_call.1} parent=1 // pred_region
      %28 = dma.done [#allocation3], 2048
    $region17: #{tpu_custom_call.1} parent=1 // pred_fallthru
      _
    %v29 = vld [vmem:[#allocation2] sm:$0xff]
    %v30 = vld [vmem:[#allocation2 + $0x8] sm:$0xff]
    %v31 = vld [vmem:[#allocation2 + $0x10] sm:$0xff]
    %v32 = vld [vmem:[#allocation2 + $0x18] sm:$0xff]
    %v33 = vld [vmem:[#allocation2 + $0x20] sm:$0xff]
    %v34 = vld [vmem:[#allocation2 + $0x28] sm:$0xff]
    %v35 = vld [vmem:[#allocation2 + $0x30] sm:$0xff]
    %v36 = vld [vmem:[#allocation2 + $0x38] sm:$0xff]
    %v37 = vld [vmem:[#allocation2 + $0x40] sm:$0xff]
    %v38 = vld [vmem:[#allocation2 + $0x48] sm:$0xff]
    %v39 = vld [vmem:[#allocation2 + $0x50] sm:$0xff]
    %v40 = vld [vmem:[#allocation2 + $0x58] sm:$0xff]
    %v41 = vld [vmem:[#allocation2 + $0x60] sm:$0xff]
    %v42 = vld [vmem:[#allocation2 + $0x68] sm:$0xff]
    %v43 = vld [vmem:[#allocation2 + $0x70] sm:$0xff]
    %v44 = vld [vmem:[#allocation2 + $0x78] sm:$0xff]
    %v45 = vld [vmem:[%s1] sm:$0xf]
    %v46 = vld [vmem:[%s2] sm:$0xff]
    %v47 = vld [vmem:[%s2 + $0x8] sm:$0xff]
    %v48 = vld [vmem:[%s2 + $0x10] sm:$0xff]
    %v49 = vld [vmem:[%s2 + $0x18] sm:$0xff]
    %v50 = vld [vmem:[%s2 + $0x20] sm:$0xff]
    %v51 = vld [vmem:[%s2 + $0x28] sm:$0xff]
    %v52 = vld [vmem:[%s2 + $0x30] sm:$0xff]
    %v53 = vld [vmem:[%s2 + $0x38] sm:$0xff]
    %54 = vrot.lane.b32.xlu0 %v29, 127
    %v55 = vpop.permute.xlu0 %54
    %56 = vrot.lane.b32.xlu0 %v31, 127
    %v57 = vpop.permute.xlu0 %56
    %58 = vrot.lane.b32.xlu0 %v33, 127
    %v59 = vpop.permute.xlu0 %58
    %60 = vrot.lane.b32.xlu0 %v35, 127
    %v61 = vpop.permute.xlu0 %60
    %62 = vrot.lane.b32.xlu0 %v37, 127
    %v63 = vpop.permute.xlu0 %62
    %64 = vrot.lane.b32.xlu0 %v39, 127
    %v65 = vpop.permute.xlu0 %64
    %66 = vrot.lane.b32.xlu0 %v41, 127
    %v67 = vpop.permute.xlu0 %66
    %68 = vrot.lane.b32.xlu0 %v43, 127
    %v69 = vpop.permute.xlu0 %68
    %70 = vrot.lane.b32.xlu0 %v30, 127
    %v71 = vpop.permute.xlu0 %70
    %72 = vrot.lane.b32.xlu0 %v32, 127
    %v73 = vpop.permute.xlu0 %72
    %74 = vrot.lane.b32.xlu0 %v34, 127
    %v75 = vpop.permute.xlu0 %74
    %76 = vrot.lane.b32.xlu0 %v36, 127
    %v77 = vpop.permute.xlu0 %76
    %78 = vrot.lane.b32.xlu0 %v38, 127
    %v79 = vpop.permute.xlu0 %78
    %80 = vrot.lane.b32.xlu0 %v40, 127
    %v81 = vpop.permute.xlu0 %80
    %82 = vrot.lane.b32.xlu0 %v42, 127
    %v83 = vpop.permute.xlu0 %82
    %84 = vrot.lane.b32.xlu0 %v44, 127
    %v85 = vpop.permute.xlu0 %84
    %v86 = vlaneseq
    %v87 = vand.u32 %v86, 127
    %vm88 = vcmp.lt.s32.totalorder %v87, 127
    %v89 = vsel %vm88, %v55, %v71
    %v90 = vsel %vm88, %v57, %v73
    %v91 = vsel %vm88, %v59, %v75
    %v92 = vsel %vm88, %v61, %v77
    %v93 = vsel %vm88, %v63, %v79
    %v94 = vsel %vm88, %v65, %v81
    %v95 = vsel %vm88, %v67, %v83
    %v96 = vsel %vm88, %v69, %v85
    %v97 = vsel %vm88, %v71, %v55
    %v98 = vsel %vm88, %v73, %v57
    %v99 = vsel %vm88, %v75, %v59
    %v100 = vsel %vm88, %v77, %v61
    %v101 = vsel %vm88, %v79, %v63
    %v102 = vsel %vm88, %v81, %v65
    %v103 = vsel %vm88, %v83, %v67
    %v104 = vsel %vm88, %v85, %v69
    %v105 = vsub.f32 %v89, %v29
    %v106 = vsub.f32 %v97, %v30
    %v107 = vsub.f32 %v90, %v31
    %v108 = vsub.f32 %v98, %v32
    %v109 = vsub.f32 %v91, %v33
    %v110 = vsub.f32 %v99, %v34
    %v111 = vsub.f32 %v92, %v35
    %v112 = vsub.f32 %v100, %v36
    %v113 = vsub.f32 %v93, %v37
    %v114 = vsub.f32 %v101, %v38
    %v115 = vsub.f32 %v94, %v39
    %v116 = vsub.f32 %v102, %v40
    %v117 = vsub.f32 %v95, %v41
    %v118 = vsub.f32 %v103, %v42
    %v119 = vsub.f32 %v96, %v43
    %v120 = vsub.f32 %v104, %v44
    %v121 = vand.u32 2147483647, %v105
    %v122 = vand.u32 2147483647, %v106
    %v123 = vand.u32 2147483647, %v107
    %v124 = vand.u32 2147483647, %v108
    %v125 = vand.u32 2147483647, %v109
    %v126 = vand.u32 2147483647, %v110
    %v127 = vand.u32 2147483647, %v111
    %v128 = vand.u32 2147483647, %v112
    %v129 = vand.u32 2147483647, %v113
    %v130 = vand.u32 2147483647, %v114
    %v131 = vand.u32 2147483647, %v115
    %v132 = vand.u32 2147483647, %v116
    %v133 = vand.u32 2147483647, %v117
    %v134 = vand.u32 2147483647, %v118
    %v135 = vand.u32 2147483647, %v119
    %v136 = vand.u32 2147483647, %v120
    %137 = vrot.lane.b32.xlu0 %v29, 112
    %v138 = vpop.permute.xlu0 %137
    %139 = vrot.lane.b32.xlu0 %v31, 112
    %v140 = vpop.permute.xlu0 %139
    %141 = vrot.lane.b32.xlu0 %v33, 112
    %v142 = vpop.permute.xlu0 %141
    %143 = vrot.lane.b32.xlu0 %v35, 112
    %v144 = vpop.permute.xlu0 %143
    %145 = vrot.lane.b32.xlu0 %v37, 112
    %v146 = vpop.permute.xlu0 %145
    %147 = vrot.lane.b32.xlu0 %v39, 112
    %v148 = vpop.permute.xlu0 %147
    %149 = vrot.lane.b32.xlu0 %v41, 112
    %v150 = vpop.permute.xlu0 %149
    %151 = vrot.lane.b32.xlu0 %v43, 112
    %v152 = vpop.permute.xlu0 %151
    %153 = vrot.lane.b32.xlu0 %v30, 112
    %v154 = vpop.permute.xlu0 %153
    %155 = vrot.lane.b32.xlu0 %v32, 112
    %v156 = vpop.permute.xlu0 %155
    %157 = vrot.lane.b32.xlu0 %v34, 112
    %v158 = vpop.permute.xlu0 %157
    %159 = vrot.lane.b32.xlu0 %v36, 112
    %v160 = vpop.permute.xlu0 %159
    %161 = vrot.lane.b32.xlu0 %v38, 112
    %v162 = vpop.permute.xlu0 %161
    %163 = vrot.lane.b32.xlu0 %v40, 112
    %v164 = vpop.permute.xlu0 %163
    %165 = vrot.lane.b32.xlu0 %v42, 112
    %v166 = vpop.permute.xlu0 %165
    %167 = vrot.lane.b32.xlu0 %v44, 112
    %v168 = vpop.permute.xlu0 %167
    %vm169 = vcmp.lt.s32.totalorder %v87, 112
    %v170 = vsel %vm169, %v138, %v154
    %v171 = vsel %vm169, %v140, %v156
    %v172 = vsel %vm169, %v142, %v158
    %v173 = vsel %vm169, %v144, %v160
    %v174 = vsel %vm169, %v146, %v162
    %v175 = vsel %vm169, %v148, %v164
    %v176 = vsel %vm169, %v150, %v166
    %v177 = vsel %vm169, %v152, %v168
    %v178 = vsel %vm169, %v154, %v138
    %v179 = vsel %vm169, %v156, %v140
    %v180 = vsel %vm169, %v158, %v142
    %v181 = vsel %vm169, %v160, %v144
    %v182 = vsel %vm169, %v162, %v146
    %v183 = vsel %vm169, %v164, %v148
    %v184 = vsel %vm169, %v166, %v150
    %v185 = vsel %vm169, %v168, %v152
    %v186 = vsub.f32 %v170, %v29
    %v187 = vsub.f32 %v178, %v30
    %v188 = vsub.f32 %v171, %v31
    %v189 = vsub.f32 %v179, %v32
    %v190 = vsub.f32 %v172, %v33
    %v191 = vsub.f32 %v180, %v34
    %v192 = vsub.f32 %v173, %v35
    %v193 = vsub.f32 %v181, %v36
    %v194 = vsub.f32 %v174, %v37
    %v195 = vsub.f32 %v182, %v38
    %v196 = vsub.f32 %v175, %v39
    %v197 = vsub.f32 %v183, %v40
    %v198 = vsub.f32 %v176, %v41
    %v199 = vsub.f32 %v184, %v42
    %v200 = vsub.f32 %v177, %v43
    %v201 = vsub.f32 %v185, %v44
    %v202 = vand.u32 2147483647, %v186
    %v203 = vand.u32 2147483647, %v187
    %v204 = vand.u32 2147483647, %v188
    %v205 = vand.u32 2147483647, %v189
    %v206 = vand.u32 2147483647, %v190
    %v207 = vand.u32 2147483647, %v191
    %v208 = vand.u32 2147483647, %v192
    %v209 = vand.u32 2147483647, %v193
    %v210 = vand.u32 2147483647, %v194
    %v211 = vand.u32 2147483647, %v195
    %v212 = vand.u32 2147483647, %v196
    %v213 = vand.u32 2147483647, %v197
    %v214 = vand.u32 2147483647, %v198
    %v215 = vand.u32 2147483647, %v199
    %v216 = vand.u32 2147483647, %v200
    %v217 = vand.u32 2147483647, %v201
    %v218 = vrot.slane %v29, 1
    %v219 = vrot.slane %v30, 1
    %v220 = vrot.slane %v31, 1
    %v221 = vrot.slane %v32, 1
    %v222 = vrot.slane %v33, 1
    %v223 = vrot.slane %v34, 1
    %v224 = vrot.slane %v35, 1
    %v225 = vrot.slane %v36, 1
    %v226 = vrot.slane %v37, 1
    %v227 = vrot.slane %v38, 1
    %v228 = vrot.slane %v39, 1
    %v229 = vrot.slane %v40, 1
    %v230 = vrot.slane %v41, 1
    %v231 = vrot.slane %v42, 1
    %v232 = vrot.slane %v43, 1
    %v233 = vrot.slane %v44, 1
    %v234 = vlaneseq
    %v235 = vshrl.u32 %v234, 7
    %vm236 = vcmp.lt.s32.totalorder %v235, 7
    %v237 = vsel %vm236, %v230, %v232
    %v238 = vsel %vm236, %v231, %v233
    %v239 = vsel %vm236, %v228, %v230
    %v240 = vsel %vm236, %v229, %v231
    %v241 = vsel %vm236, %v226, %v228
    %v242 = vsel %vm236, %v227, %v229
    %v243 = vsel %vm236, %v224, %v226
    %v244 = vsel %vm236, %v225, %v227
    %v245 = vsel %vm236, %v222, %v224
    %v246 = vsel %vm236, %v223, %v225
    %v247 = vsel %vm236, %v220, %v222
    %v248 = vsel %vm236, %v221, %v223
    %v249 = vsel %vm236, %v218, %v220
    %v250 = vsel %vm236, %v219, %v221
    %v251 = vsel %vm236, %v232, %v218
    %v252 = vsel %vm236, %v233, %v219
    %v253 = vsub.f32 %v249, %v29
    %v254 = vsub.f32 %v250, %v30
    %v255 = vsub.f32 %v247, %v31
    %v256 = vsub.f32 %v248, %v32
    %v257 = vsub.f32 %v245, %v33
    %v258 = vsub.f32 %v246, %v34
    %v259 = vsub.f32 %v243, %v35
    %v260 = vsub.f32 %v244, %v36
    %v261 = vsub.f32 %v241, %v37
    %v262 = vsub.f32 %v242, %v38
    %v263 = vsub.f32 %v239, %v39
    %v264 = vsub.f32 %v240, %v40
    %v265 = vsub.f32 %v237, %v41
    %v266 = vsub.f32 %v238, %v42
    %v267 = vsub.f32 %v251, %v43
    %v268 = vsub.f32 %v252, %v44
    %v269 = vand.u32 2147483647, %v253
    %v270 = vand.u32 2147483647, %v254
    %v271 = vand.u32 2147483647, %v255
    %v272 = vand.u32 2147483647, %v256
    %v273 = vand.u32 2147483647, %v257
    %v274 = vand.u32 2147483647, %v258
    %v275 = vand.u32 2147483647, %v259
    %v276 = vand.u32 2147483647, %v260
    %v277 = vand.u32 2147483647, %v261
    %v278 = vand.u32 2147483647, %v262
    %v279 = vand.u32 2147483647, %v263
    %v280 = vand.u32 2147483647, %v264
    %v281 = vand.u32 2147483647, %v265
    %v282 = vand.u32 2147483647, %v266
    %v283 = vand.u32 2147483647, %v267
    %v284 = vand.u32 2147483647, %v268
    %v285 = vadd.s32 %v235, 8
    %v286 = vadd.s32 %v235, 16
    %v287 = vadd.s32 %v235, 24
    %v288 = vadd.s32 %v235, 32
    %v289 = vadd.s32 %v235, 40
    %v290 = vadd.s32 %v235, 48
    %v291 = vadd.s32 %v235, 56
    %vm292 = vcmp.lt.s32.totalorder %v235, 63
    %vm293 = vcmp.lt.s32.totalorder %v285, 63
    %vm294 = vcmp.lt.s32.totalorder %v286, 63
    %vm295 = vcmp.lt.s32.totalorder %v287, 63
    %vm296 = vcmp.lt.s32.totalorder %v288, 63
    %vm297 = vcmp.lt.s32.totalorder %v289, 63
    %vm298 = vcmp.lt.s32.totalorder %v290, 63
    %vm299 = vcmp.lt.s32.totalorder %v291, 63
    %v300 = vsel %vm292, %v46, 0.0
    %v301 = vsel %vm293, %v47, 0.0
    %v302 = vsel %vm294, %v48, 0.0
    %v303 = vsel %vm295, %v49, 0.0
    %v304 = vsel %vm296, %v50, 0.0
    %v305 = vsel %vm297, %v51, 0.0
    %v306 = vsel %vm298, %v52, 0.0
    %v307 = vsel %vm299, %v53, 0.0
    %v309 = vlaneseq
    %v310 = vshrl.u32 %v309, 7
    %v311 = vsub.s32 0, %v310
    %v312 = vrot.slane %v45, %v311
    %v313 = vlaneseq
    %v314 = vshrl.u32 %v313, 7
    %v315 = vsub.s32 2, %v314
    %v316 = vrot.slane %v45, %v315
    %v319 = vlaneseq
    %v320 = vshrl.u32 %v319, 7
    %v321 = vsub.s32 0, %v320
    %v322 = vrot.slane %v312, %v321
    %v323 = vlaneseq
    %v324 = vshrl.u32 %v323, 7
    %v325 = vsub.s32 0, %v324
    %v326 = vrot.slane %v316, %v325
    %v327 = vmul.f32 %v121, %v322
    %v328 = vmul.f32 %v122, %v326
    %v329 = vmul.f32 %v123, %v322
    %v330 = vmul.f32 %v124, %v326
    %v331 = vmul.f32 %v125, %v322
    %v332 = vmul.f32 %v126, %v326
    %v333 = vmul.f32 %v127, %v322
    %v334 = vmul.f32 %v128, %v326
    %v335 = vmul.f32 %v129, %v322
    %v336 = vmul.f32 %v130, %v326
    %v337 = vmul.f32 %v131, %v322
    %v338 = vmul.f32 %v132, %v326
    %v339 = vmul.f32 %v133, %v322
    %v340 = vmul.f32 %v134, %v326
    %v341 = vmul.f32 %v135, %v322
    %v342 = vmul.f32 %v136, %v326
    %v343 = vlaneseq
    %v344 = vshrl.u32 %v343, 7
    %v345 = vsub.s32 1, %v344
    %v346 = vrot.slane %v45, %v345
    %v347 = vlaneseq
    %v348 = vshrl.u32 %v347, 7
    %v349 = vsub.s32 3, %v348
    %v350 = vrot.slane %v45, %v349
    %v353 = vlaneseq
    %v354 = vshrl.u32 %v353, 7
    %v355 = vsub.s32 1, %v354
    %v356 = vrot.slane %v346, %v355
    %v357 = vlaneseq
    %v358 = vshrl.u32 %v357, 7
    %v359 = vsub.s32 1, %v358
    %v360 = vrot.slane %v350, %v359
    %v361 = vmul.f32 %v202, %v356
    %v362 = vmul.f32 %v203, %v360
    %v363 = vmul.f32 %v204, %v356
    %v364 = vmul.f32 %v205, %v360
    %v365 = vmul.f32 %v206, %v356
    %v366 = vmul.f32 %v207, %v360
    %v367 = vmul.f32 %v208, %v356
    %v368 = vmul.f32 %v209, %v360
    %v369 = vmul.f32 %v210, %v356
    %v370 = vmul.f32 %v211, %v360
    %v371 = vmul.f32 %v212, %v356
    %v372 = vmul.f32 %v213, %v360
    %v373 = vmul.f32 %v214, %v356
    %v374 = vmul.f32 %v215, %v360
    %v375 = vmul.f32 %v216, %v356
    %v376 = vmul.f32 %v217, %v360
    %v377 = vadd.f32 %v327, %v361
    %v378 = vadd.f32 %v328, %v362
    %v379 = vadd.f32 %v329, %v363
    %v380 = vadd.f32 %v330, %v364
    %v381 = vadd.f32 %v331, %v365
    %v382 = vadd.f32 %v332, %v366
    %v383 = vadd.f32 %v333, %v367
    %v384 = vadd.f32 %v334, %v368
    %v385 = vadd.f32 %v335, %v369
    %v386 = vadd.f32 %v336, %v370
    %v387 = vadd.f32 %v337, %v371
    %v388 = vadd.f32 %v338, %v372
    %v389 = vadd.f32 %v339, %v373
    %v390 = vadd.f32 %v340, %v374
    %v391 = vadd.f32 %v341, %v375
    %v392 = vadd.f32 %v342, %v376
    %394 = vset.pattern.permute.xlu0 0
    %395 = vperm.xlu0 %394, %v300
    %v396 = vpop.permute.xlu0 %395
    %399 = vset.pattern.permute.xlu0 0
    %400 = vperm.xlu0 %399, %v301
    %v401 = vpop.permute.xlu0 %400
    %404 = vset.pattern.permute.xlu0 0
    %405 = vperm.xlu0 %404, %v302
    %v406 = vpop.permute.xlu0 %405
    %409 = vset.pattern.permute.xlu0 0
    %410 = vperm.xlu0 %409, %v303
    %v411 = vpop.permute.xlu0 %410
    %414 = vset.pattern.permute.xlu0 0
    %415 = vperm.xlu0 %414, %v304
    %v416 = vpop.permute.xlu0 %415
    %419 = vset.pattern.permute.xlu0 0
    %420 = vperm.xlu0 %419, %v305
    %v421 = vpop.permute.xlu0 %420
    %424 = vset.pattern.permute.xlu0 0
    %425 = vperm.xlu0 %424, %v306
    %v426 = vpop.permute.xlu0 %425
    %429 = vset.pattern.permute.xlu0 0
    %430 = vperm.xlu0 %429, %v307
    %v431 = vpop.permute.xlu0 %430
    %v433 = vmul.f32 %v269, %v396
    %v434 = vmul.f32 %v270, %v396
    %v435 = vmul.f32 %v271, %v401
    %v436 = vmul.f32 %v272, %v401
    %v437 = vmul.f32 %v273, %v406
    %v438 = vmul.f32 %v274, %v406
    %v439 = vmul.f32 %v275, %v411
    %v440 = vmul.f32 %v276, %v411
    %v441 = vmul.f32 %v277, %v416
    %v442 = vmul.f32 %v278, %v416
    %v443 = vmul.f32 %v279, %v421
    %v444 = vmul.f32 %v280, %v421
    %v445 = vmul.f32 %v281, %v426
    %v446 = vmul.f32 %v282, %v426
    %v447 = vmul.f32 %v283, %v431
    %v448 = vmul.f32 %v284, %v431
    %v449 = vadd.f32 %v377, %v433
    %v450 = vadd.f32 %v378, %v434
    %v451 = vadd.f32 %v379, %v435
    %v452 = vadd.f32 %v380, %v436
    %v453 = vadd.f32 %v381, %v437
    %v454 = vadd.f32 %v382, %v438
    %v455 = vadd.f32 %v383, %v439
    %v456 = vadd.f32 %v384, %v440
    %v457 = vadd.f32 %v385, %v441
    %v458 = vadd.f32 %v386, %v442
    %v459 = vadd.f32 %v387, %v443
    %v460 = vadd.f32 %v388, %v444
    %v461 = vadd.f32 %v389, %v445
    %v462 = vadd.f32 %v390, %v446
    %v463 = vadd.f32 %v391, %v447
    %v464 = vadd.f32 %v392, %v448
    %v465 = vadd.f32 %v449, %v451
    %v466 = vadd.f32 %v465, %v453
    %v467 = vadd.f32 %v466, %v455
    %v468 = vadd.f32 %v467, %v457
    %v469 = vadd.f32 %v468, %v459
    %v470 = vadd.f32 %v469, %v461
    %v471 = vadd.f32 %v470, %v463
    %v472 = vrot.slane %v471, 4
    %v473 = vadd.f32 %v471, %v472
    %v474 = vrot.slane %v473, 2
    %v475 = vadd.f32 %v473, %v474
    %v476 = vrot.slane %v475, 1
    %v477 = vadd.f32 %v475, %v476
    %v478 = vadd.f32 %v450, %v452
    %v479 = vadd.f32 %v478, %v454
    %v480 = vadd.f32 %v479, %v456
    %v481 = vadd.f32 %v480, %v458
    %v482 = vadd.f32 %v481, %v460
    %v483 = vadd.f32 %v482, %v462
    %v484 = vadd.f32 %v483, %v464
    %v485 = vrot.slane %v484, 4
    %v486 = vadd.f32 %v484, %v485
    %v487 = vrot.slane %v486, 2
    %v488 = vadd.f32 %v486, %v487
    %v489 = vrot.slane %v488, 1
    %v490 = vadd.f32 %v488, %v489
    %v493 = vcombine.low %v477, %v490
    %v495 = vunpack.c.l.s4 1966171168
    %v496 = vunpack.c.0.s8 %v495
    %v497 = vlaneseq
    %v498 = vshrl.u32 %v497, 7
    %v499 = vsub.s32 %v496, %v498
    %v500 = vrot.slane %v493, %v499
    %v502 = vunpack.c.l.s4 1966171168
    %v503 = vunpack.c.0.s8 %v502
    %v504 = vlaneseq
    %v505 = vshrl.u32 %v504, 7
    %v506 = vsub.s32 %v503, %v505
    %v507 = vrot.slane %v500, %v506
    %v509 = vlaneseq
    %vm510 = vcmp.ge.s32.totalorder %v509, 0
    %vm511 = vcmp.lt.s32.totalorder %v509, 256
    %vm512 = vmand %vm510, %vm511
    %513 = vst.msk [vmem:[#allocation5] sm:$0x3] %vm512, %v507
    // Predicated region
    $region18: #{tpu_custom_call.1} parent=1 // pred_check
      _
    $region19: #{tpu_custom_call.1} parent=1 // pred_check_branch
      %515 = sbr.rel (0) target = $region21
    $region20: #{tpu_custom_call.1} parent=1 // pred_region
      %s517 = ssub.s32 32, 32
      %518 = vsyncadd [#allocation4], %s517
      %s520 = sshll.u32 [#allocation5], 4
      %s521 = int_to_ptr.vmem [resolvable:$true] %s520
      %523 = dma.vmem_to_hbm [thread:$0]  %s521, 32, %s3, [#allocation4]
    $region21: #{tpu_custom_call.1} parent=1 // pred_fallthru
      _
    // Predicated region
    $region22: #{tpu_custom_call.1} parent=1 // pred_check
      _
    $region23: #{tpu_custom_call.1} parent=1 // pred_check_branch
      %525 = sbr.rel (0) target = $region25
    $region24: #{tpu_custom_call.1} parent=1 // pred_region
      %526 = dma.done [#allocation4], 32
    $region25: #{tpu_custom_call.1} parent=1 // pred_fallthru
      _
    %527 = vsyncpa [#allocation3], 1
    %528 = vsyncpa [#allocation4], 1

</llo_original>
